<compile_context>
chip_gen: v6e
topology: v6e:2x2x1
jax: 0.10.0
libtpu: 0.0.40
codegen_flags: <defaults>
</compile_context>

<pallas_src>
import functools
import math

import jax
import jax.numpy as jnp
from jax import lax
from jax.experimental import pallas as pl
from jax.experimental.pallas import tpu as pltpu

OMEGA = 10.0
EPSILON = 2.0
C_CONST = OMEGA - OMEGA * math.log(1.0 + OMEGA / EPSILON)

LANES = 128


def _round_up(x, m):
    return ((x + m - 1) // m) * m


def _num_tensorcores():
    """Trace-time TensorCores-per-chip query; conservative fallback of 1."""
    try:
        info = pltpu.get_tpu_info()
    except Exception:
        return 1
    for attr in ("num_cores", "num_tensorcores", "num_tensor_cores",
                 "tensorcore_count", "cores_per_chip", "core_count"):
        v = getattr(info, attr, None)
        if isinstance(v, int) and v >= 1:
            return v
    # TODO(synk): if plain "parallel" is not honored for the core-split axis on
    # v7x, switch that axis to pltpu.CORE_PARALLEL once the core count is known.
    return 1


def _wing_loss_kernel(pred_ref, target_ref, out_ref, *,
                      tile_rows, bpc, rows, num_blocks):
    c = pl.program_id(0)   # "parallel" core-split axis
    i = pl.program_id(1)   # "arbitrary" reduction axis

    @pl.when(i == 0)
    def _init():
        out_ref[...] = jnp.zeros_like(out_ref)

    d = jnp.abs(target_ref[...].astype(jnp.float32)
                - pred_ref[...].astype(jnp.float32))
    small = OMEGA * jnp.log1p(d * (1.0 / EPSILON))   # delta <  omega branch
    large = d - C_CONST                              # delta >= omega branch
    loss = jnp.where(d < OMEGA, small, large)

    b_raw = c * bpc + i                              # unclamped block index
    base_row = jnp.minimum(b_raw, num_blocks - 1) * tile_rows
    is_full = jnp.logical_and(b_raw < num_blocks,
                              base_row + tile_rows <= rows)

    @pl.when(is_full)
    def _acc_full():
        # Full in-bounds block: no mask work at all (VALU is the marginal
        # slot on v7x). Pure sublane partial-sum into the (8,128) accumulator.
        partial = jnp.sum(loss.reshape(-1, 8, LANES), axis=0)
        out_ref[...] += partial[None]

    @pl.when(jnp.logical_not(is_full))
    def _acc_tail():
        # Tail block (rows beyond `rows` hold unspecified DMA padding) or a
        # clamped-duplicate block (must contribute nothing).  Keep select
        # semantics so NaN/Inf garbage cannot leak into the sum.
        row_limit = jnp.where(b_raw < num_blocks, rows, 0)
        row_ids = base_row + lax.broadcasted_iota(jnp.int32, loss.shape, 0)
        masked = jnp.where(row_ids < row_limit, loss, 0.0)
        partial = jnp.sum(masked.reshape(-1, 8, LANES), axis=0)
        out_ref[...] += partial[None]


def wing_loss(pred, target, *, tile_rows=8192):
    assert pred.shape == target.shape
    n = pred.size
    itemsize = jnp.dtype(pred.dtype).itemsize
    # dtype-aware minimum sublane tile: 8 (f32), 16 (bf16), 32 (int8/fp8).
    sub = max(8, 32 // max(itemsize, 1))

    p = jnp.ravel(pred)     # free reshape of a contiguous array
    t = jnp.ravel(target)

    # Only the (rare) n % 128 != 0 case — plus tiny inputs below one minimal
    # block — pays a pad copy; padded entries have pred == target -> zero loss,
    # and we divide by the true n below.
    # TODO(synk): a fully copy-free sub-128 tail needs 1-D blocks / manual DMA.
    pad_to = max(_round_up(n, LANES), sub * LANES)
    rem = pad_to - n
    if rem:
        p = jnp.pad(p, (0, rem))
        t = jnp.pad(t, (0, rem))
    rows = pad_to // LANES

    p2 = p.reshape(rows, LANES)
    t2 = t.reshape(rows, LANES)

    # Tile: as large as requested, floored to the dtype's sublane multiple and
    # never taller than the slab (rows >= sub is guaranteed by pad_to above),
    # so only the standard partial-tail block can run past the array.
    tile = min(_round_up(tile_rows, sub), (rows // sub) * sub)
    num_blocks = pl.cdiv(rows, tile)

    # Split row-blocks across TensorCores only when the chip actually has more
    # than one; single-TC v5e/v6e use nc=1 (no duplicate-block DMA, no extra
    # output writeback).
    nc = max(1, min(_num_tensorcores(), num_blocks))
    bpc = pl.cdiv(num_blocks, nc)

    def in_map(c, i):
        # Clamp so no block is fully out of bounds; clamped duplicates are
        # zeroed by the in-kernel masked branch.
        return (jnp.minimum(c * bpc + i, num_blocks - 1), 0)

    kernel = functools.partial(_wing_loss_kernel, tile_rows=tile, bpc=bpc,
                               rows=rows, num_blocks=num_blocks)

    block_bytes = tile * LANES * itemsize
    # 2 inputs x double buffering + headroom.  v5e default scoped VMEM (16 MiB)
    # is too small for 8192-row f32 tiles; 48 MiB cap stays under v7x's 64 MiB.
    vmem_limit = int(min(max(4 * block_bytes + (8 << 20), 16 << 20), 48 << 20))

    cost = pl.CostEstimate(
        flops=7 * n,
        transcendentals=n,
        bytes_accessed=int(p2.size * itemsize + t2.size * itemsize
                           + nc * 8 * LANES * 4),
    )

    partials = pl.pallas_call(
        kernel,
        out_shape=jax.ShapeDtypeStruct((nc, 8, LANES), jnp.float32),
        grid_spec=pltpu.PrefetchScalarGridSpec(
            num_scalar_prefetch=0,
            grid=(nc, bpc),
            in_specs=[
                pl.BlockSpec((tile, LANES), in_map),
                pl.BlockSpec((tile, LANES), in_map),
            ],
            out_specs=pl.BlockSpec((1, 8, LANES), lambda c, i: (c, 0, 0)),
        ),
        compiler_params=pltpu.CompilerParams(
            dimension_semantics=("parallel", "arbitrary"),
            vmem_limit_bytes=vmem_limit),
        cost_estimate=cost,
    )(p2, t2)

    # Single final cross-lane reduce + mean, done once outside the grid loop.
    return jnp.sum(partials) / jnp.float32(n)


def _wing_loss_ref(pred, target):
    d = jnp.abs(target.astype(jnp.float32) - pred.astype(jnp.float32))
    small = OMEGA * jnp.log1p(d / EPSILON)
    large = d - C_CONST
    loss = jnp.where(d < OMEGA, small, large)
    return jnp.sum(loss) / d.size


if __name__ == "__main__":
    key = jax.random.PRNGKey(0)

    # Landmark-style small input; scaled so both wing branches are exercised.
    kp, kt, kp2, kt2 = jax.random.split(key, 4)
    shape = (2, 4, 16, 16)  # 2048 elements = 16 rows x 128 lanes
    pred = jax.random.normal(kp, shape, dtype=jnp.float32) * 15.0
    target = jax.random.normal(kt, shape, dtype=jnp.float32) * 15.0

    out = jax.block_until_ready(wing_loss(pred, target))
    ref = _wing_loss_ref(pred, target)
    assert jnp.allclose(out, ref, rtol=1e-5, atol=1e-5), (out, ref)

    # Second shape whose row count is not a multiple of the tile -> exercises
    # the masked tail-block branch.
    shape2 = (5, 2, 128)    # 1280 elements = 10 rows x 128 lanes
    pred2 = jax.random.normal(kp2, shape2, dtype=jnp.float32) * 15.0
    target2 = jax.random.normal(kt2, shape2, dtype=jnp.float32) * 15.0

    out2 = jax.block_until_ready(wing_loss(pred2, target2, tile_rows=8))
    ref2 = _wing_loss_ref(pred2, target2)
    assert jnp.allclose(out2, ref2, rtol=1e-5, atol=1e-5), (out2, ref2)

    print("KERNEL_OK")
</pallas_src>

<mosaic_0001>
module attributes {stable_mosaic.version = 11 : i64} {
  func.func @_wing_loss_kernel(%arg0: i32, %arg1: i32, %arg2: memref<16x128xf32, #tpu.memory_space<vmem>>, %arg3: memref<16x128xf32, #tpu.memory_space<vmem>>, %arg4: memref<1x8x128xf32, #tpu.memory_space<vmem>>) attributes {dimension_semantics = [#tpu.dimension_semantics<parallel>, #tpu.dimension_semantics<arbitrary>], iteration_bounds = array<i64: 1, 1>, scalar_prefetch = 0 : i64, scratch_operands = 0 : i64, tpu.core_type = #tpu.core_type<tc>, window_params = [{transform_indices = @transform_0, window_bounds = array<i64: 16, 128>}, {transform_indices = @transform_1, window_bounds = array<i64: 16, 128>}, {transform_indices = @transform_2, window_bounds = array<i64: 1, 8, 128>}]} {
    %c0_i32 = arith.constant 0 : i32
    %0 = arith.cmpi eq, %arg1, %c0_i32 : i32
    %1 = arith.extui %0 : i1 to i32
    %c0_i32_0 = arith.constant 0 : i32
    %2 = arith.cmpi ne, %1, %c0_i32_0 : i32
    scf.if %2 {
      %cst_13 = arith.constant 0.000000e+00 : f32
      %30 = vector.broadcast %cst_13 : f32 to vector<1x8x128xf32>
      %c0_14 = arith.constant 0 : index
      %c0_15 = arith.constant 0 : index
      %c0_16 = arith.constant 0 : index
      %31 = vector.load %arg4[%c0_14, %c0_15, %c0_16] : memref<1x8x128xf32, #tpu.memory_space<vmem>>, vector<1x8x128xf32>
      tpu.vector_store %arg4[%c0_14, %c0_15, %c0_16], %30 {strides = array<i32>} : memref<1x8x128xf32, #tpu.memory_space<vmem>>, vector<1x8x128xf32>,
    } else {
    }
    %c0 = arith.constant 0 : index
    %c0_1 = arith.constant 0 : index
    %3 = vector.load %arg3[%c0, %c0_1] : memref<16x128xf32, #tpu.memory_space<vmem>>, vector<16x128xf32>
    %c0_2 = arith.constant 0 : index
    %c0_3 = arith.constant 0 : index
    %4 = vector.load %arg2[%c0_2, %c0_3] : memref<16x128xf32, #tpu.memory_space<vmem>>, vector<16x128xf32>
    %5 = arith.subf %3, %4 : vector<16x128xf32>
    %6 = math.absf %5 : vector<16x128xf32>
    %cst = arith.constant 5.000000e-01 : f32
    %7 = vector.broadcast %cst : f32 to vector<16x128xf32>
    %8 = arith.mulf %6, %7 : vector<16x128xf32>
    %9 = math.log1p %8 : vector<16x128xf32>
    %cst_4 = arith.constant 1.000000e+01 : f32
    %10 = vector.broadcast %cst_4 : f32 to vector<16x128xf32>
    %11 = arith.mulf %10, %9 : vector<16x128xf32>
    %cst_5 = arith.constant -7.9175949 : f32
    %12 = vector.broadcast %cst_5 : f32 to vector<16x128xf32>
    %13 = arith.subf %6, %12 : vector<16x128xf32>
    %cst_6 = arith.constant 1.000000e+01 : f32
    %14 = vector.broadcast %cst_6 : f32 to vector<16x128xf32>
    %15 = arith.cmpf olt, %6, %14 : vector<16x128xf32>
    %16 = arith.select %15, %11, %13 : vector<16x128xi1>, vector<16x128xf32>
    %c1_i32 = arith.constant 1 : i32
    %17 = arith.muli %arg0, %c1_i32 : i32
    %18 = arith.addi %17, %arg1 : i32
    %c0_i32_7 = arith.constant 0 : i32
    %19 = arith.minsi %18, %c0_i32_7 : i32
    %c16_i32 = arith.constant 16 : i32
    %20 = arith.muli %19, %c16_i32 : i32
    %c1_i32_8 = arith.constant 1 : i32
    %21 = arith.cmpi slt, %18, %c1_i32_8 : i32
    %c16_i32_9 = arith.constant 16 : i32
    %22 = arith.addi %20, %c16_i32_9 : i32
    %c16_i32_10 = arith.constant 16 : i32
    %23 = arith.cmpi sle, %22, %c16_i32_10 : i32
    %24 = arith.andi %21, %23 : i1
    %25 = arith.extui %24 : i1 to i32
    %c0_i32_11 = arith.constant 0 : i32
    %26 = arith.cmpi ne, %25, %c0_i32_11 : i32
    scf.if %26 {
      %30 = vector.shape_cast %16 : vector<16x128xf32> to vector<2x8x128xf32>
      %cst_13 = arith.constant dense<0.000000e+00> : vector<8x128xf32>
      %31 = vector.multi_reduction <add>, %30, %cst_13 [0] : vector<2x8x128xf32> to vector<8x128xf32>
      %c0_14 = arith.constant 0 : index
      %c0_15 = arith.constant 0 : index
      %c0_16 = arith.constant 0 : index
      %32 = vector.load %arg4[%c0_14, %c0_15, %c0_16] : memref<1x8x128xf32, #tpu.memory_space<vmem>>, vector<1x8x128xf32>
      %33 = vector.shape_cast %31 : vector<8x128xf32> to vector<1x8x128xf32>
      %34 = arith.addf %32, %33 : vector<1x8x128xf32>
      %c0_17 = arith.constant 0 : index
      %c0_18 = arith.constant 0 : index
      %c0_19 = arith.constant 0 : index
      %35 = vector.load %arg4[%c0_17, %c0_18, %c0_19] : memref<1x8x128xf32, #tpu.memory_space<vmem>>, vector<1x8x128xf32>
      tpu.vector_store %arg4[%c0_17, %c0_18, %c0_19], %34 {strides = array<i32>} : memref<1x8x128xf32, #tpu.memory_space<vmem>>, vector<1x8x128xf32>,
    } else {
    }
    %true = arith.constant true
    %27 = arith.xori %24, %true : i1
    %28 = arith.extui %27 : i1 to i32
    %c0_i32_12 = arith.constant 0 : i32
    %29 = arith.cmpi ne, %28, %c0_i32_12 : i32
    scf.if %29 {
      %c1_i32_13 = arith.constant 1 : i32
      %30 = arith.cmpi slt, %18, %c1_i32_13 : i32
      %c16_i32_14 = arith.constant 16 : i32
      %c0_i32_15 = arith.constant 0 : i32
      %31 = arith.select %30, %c16_i32_14, %c0_i32_15 : i32
      %32 = tpu.iota {dimensions = array<i32: 0>} : vector<16x128xi32>
      %33 = vector.broadcast %20 : i32 to vector<16x128xi32>
      %34 = arith.addi %33, %32 : vector<16x128xi32>
      %35 = vector.broadcast %31 : i32 to vector<16x128xi32>
      %36 = arith.cmpi slt, %34, %35 : vector<16x128xi32>
      %cst_16 = arith.constant 0.000000e+00 : f32
      %37 = vector.broadcast %cst_16 : f32 to vector<16x128xf32>
      %38 = arith.select %36, %16, %37 : vector<16x128xi1>, vector<16x128xf32>
      %39 = vector.shape_cast %38 : vector<16x128xf32> to vector<2x8x128xf32>
      %cst_17 = arith.constant dense<0.000000e+00> : vector<8x128xf32>
      %40 = vector.multi_reduction <add>, %39, %cst_17 [0] : vector<2x8x128xf32> to vector<8x128xf32>
      %c0_18 = arith.constant 0 : index
      %c0_19 = arith.constant 0 : index
      %c0_20 = arith.constant 0 : index
      %41 = vector.load %arg4[%c0_18, %c0_19, %c0_20] : memref<1x8x128xf32, #tpu.memory_space<vmem>>, vector<1x8x128xf32>
      %42 = vector.shape_cast %40 : vector<8x128xf32> to vector<1x8x128xf32>
      %43 = arith.addf %41, %42 : vector<1x8x128xf32>
      %c0_21 = arith.constant 0 : index
      %c0_22 = arith.constant 0 : index
      %c0_23 = arith.constant 0 : index
      %44 = vector.load %arg4[%c0_21, %c0_22, %c0_23] : memref<1x8x128xf32, #tpu.memory_space<vmem>>, vector<1x8x128xf32>
      tpu.vector_store %arg4[%c0_21, %c0_22, %c0_23], %43 {strides = array<i32>} : memref<1x8x128xf32, #tpu.memory_space<vmem>>, vector<1x8x128xf32>,
    } else {
    }
    return
  }
  func.func @transform_0(%arg0: i32, %arg1: i32) -> (i32, i32) {
    %c1_i32 = arith.constant 1 : i32
    %0 = arith.muli %arg0, %c1_i32 : i32
    %1 = arith.addi %0, %arg1 : i32
    %c0_i32 = arith.constant 0 : i32
    %2 = arith.minsi %1, %c0_i32 : i32
    %c0_i32_0 = arith.constant 0 : i32
    %c0_i32_1 = arith.constant 0 : i32
    return %2, %c0_i32_0 : i32, i32
  }
  func.func @transform_1(%arg0: i32, %arg1: i32) -> (i32, i32) {
    %c1_i32 = arith.constant 1 : i32
    %0 = arith.muli %arg0, %c1_i32 : i32
    %1 = arith.addi %0, %arg1 : i32
    %c0_i32 = arith.constant 0 : i32
    %2 = arith.minsi %1, %c0_i32 : i32
    %c0_i32_0 = arith.constant 0 : i32
    %c0_i32_1 = arith.constant 0 : i32
    return %2, %c0_i32_0 : i32, i32
  }
  func.func @transform_2(%arg0: i32, %arg1: i32) -> (i32, i32, i32) {
    %c0_i32 = arith.constant 0 : i32
    %c0_i32_0 = arith.constant 0 : i32
    %c0_i32_1 = arith.constant 0 : i32
    return %arg0, %c0_i32, %c0_i32_0 : i32, i32, i32
  }
}

</mosaic_0001>

<llo_original>
// kernel: tpu_custom_call.1
$region0: #{tpu_custom_call.1}
  #allocation0 [shape = 'u32[]', space=smem, size = 0x4, offset = 0x4, fixed_abs, tag = 'smem constant byte address 0x4 - core index']
  #allocation1 [shape = 'u32[144,128]{1,0:T(1,128)}', space=vmem, size = 0x12000, scoped, tag = 'internal scratch']
  %s0 = inlined_call_operand.hbm [shape: f32[16,128], index: 0, kind: input, shape index: {}]
  %s1 = inlined_call_operand.hbm [shape: f32[16,128], index: 1, kind: input, shape index: {}]
  %s2 = inlined_call_operand.hbm [shape: f32[1,8,128], index: 2, kind: output, shape index: {}]
  %s3 = sld [smem:[#allocation0]]
  $region38: #{tpu_custom_call.1} parent=0
    _
  %s5 = ssub.s32 1, %s3
  %s6 = scalar_select 0, %s5, %s3
  $region1: #{tpu_custom_call.1} parent=0
    #allocation2 [shape = 'u8[8192]{0}', space=vmem, size = 0x2000, scoped, tag = 'input window, operand 0, single buffered']
    #allocation3 [shape = 's32[1]{0}', space=sflag, size = 0x4, scoped, tag = 'scoped memory for tpu_custom_call.1']
    #allocation4 [shape = 's32[1]{0}', space=sflag, size = 0x4, scoped, tag = 'scoped memory for tpu_custom_call.1']
    #allocation5 [shape = 'u8[8192]{0}', space=vmem, size = 0x2000, scoped, tag = 'input window, operand 1, single buffered']
    #allocation6 [shape = 's32[1]{0}', space=sflag, size = 0x4, scoped, tag = 'scoped memory for tpu_custom_call.1']
    #allocation7 [shape = 'u8[4096]{0}', space=vmem, size = 0x1000, scoped, tag = 'output window, operand 0, single buffered']
    %7 = vsyncpa [#allocation3], 0
    %8 = vsyncpa [#allocation6], 0
    %9 = vsyncpa [#allocation4], 0
    // Predicated region
    $region2: #{tpu_custom_call.1} parent=1 // pred_check
      _
    $region3: #{tpu_custom_call.1} parent=1 // pred_check_branch
      %11 = sbr.rel (0) target = $region5
    $region4: #{tpu_custom_call.1} parent=1 // pred_region
      %s12 = sadd.s32 0, 0
      %p13 = scmp.lt.s32.totalorder %s12, 0
      %s14 = scalar_select %p13, %s12, 0
      %s15 = smul.u32 2, %s14
      %s17 = ssub.s32 256, 256
      %18 = vsyncadd [#allocation3], %s17
      %s19 = smul.addr %s15, 128
      %s20 = scalar_lea.hbm %s0, %s19
      %s21 = sshll.u32 [#allocation2], 4
      %s22 = int_to_ptr.vmem [resolvable:$true] %s21
      %27 = dma.hbm_to_vmem [thread:$0]  %s20, 256, %s22, [#allocation3], 128, 128, 8
    $region5: #{tpu_custom_call.1} parent=1 // pred_fallthru
      _
    // Predicated region
    $region6: #{tpu_custom_call.1} parent=1 // pred_check
      _
    $region7: #{tpu_custom_call.1} parent=1 // pred_check_branch
      %29 = sbr.rel (0) target = $region9
    $region8: #{tpu_custom_call.1} parent=1 // pred_region
      %s30 = sadd.s32 0, 0
      %p31 = scmp.lt.s32.totalorder %s30, 0
      %s32 = scalar_select %p31, %s30, 0
      %s33 = smul.u32 2, %s32
      %s35 = ssub.s32 256, 256
      %36 = vsyncadd [#allocation6], %s35
      %s37 = smul.addr %s33, 128
      %s38 = scalar_lea.hbm %s1, %s37
      %s39 = sshll.u32 [#allocation5], 4
      %s40 = int_to_ptr.vmem [resolvable:$true] %s39
      %45 = dma.hbm_to_vmem [thread:$0]  %s38, 256, %s40, [#allocation6], 128, 128, 8
    $region9: #{tpu_custom_call.1} parent=1 // pred_fallthru
      _
    // Predicated region
    $region10: #{tpu_custom_call.1} parent=1 // pred_check
      _
    $region11: #{tpu_custom_call.1} parent=1 // pred_check_branch
      %47 = sbr.rel (0) target = $region13
    $region12: #{tpu_custom_call.1} parent=1 // pred_region
      %48 = dma.done [#allocation3], 256
    $region13: #{tpu_custom_call.1} parent=1 // pred_fallthru
      _
    // Predicated region
    $region14: #{tpu_custom_call.1} parent=1 // pred_check
      _
    $region15: #{tpu_custom_call.1} parent=1 // pred_check_branch
      %50 = sbr.rel (0) target = $region17
    $region16: #{tpu_custom_call.1} parent=1 // pred_region
      %51 = dma.done [#allocation6], 256
    $region17: #{tpu_custom_call.1} parent=1 // pred_fallthru
      _
    %s52 = sadd.s32 0, 0
    %p53 = scmp.lt.s32.totalorder %s52, 0
    %s54 = scalar_select %p53, %s52, 0
    %s55 = smul.u32 2, %s54
    %s56 = sadd.s32 0, 0
    %p57 = scmp.lt.s32.totalorder %s56, 0
    %s58 = scalar_select %p57, %s56, 0
    %s59 = smul.u32 2, %s58
    %p60 = scmp.eq.s32.totalorder 0, 0
    // Predicated region
    $region18: #{tpu_custom_call.1} parent=1 // pred_check
      %p61 = pneg %p60
    $region19: #{tpu_custom_call.1} parent=1 // pred_check_branch
      %63 = sbr.rel (%p61) target = $region21
    $region20: #{tpu_custom_call.1} parent=1 // pred_region
      %64 = vst [vmem:[#allocation7] sm:$0xff] 0.0
    $region21: #{tpu_custom_call.1} parent=1 // pred_fallthru
      _
    %v65 = vld [vmem:[#allocation5] sm:$0xff]
    %v66 = vld [vmem:[#allocation5 + $0x8] sm:$0xff]
    %v67 = vld [vmem:[#allocation2] sm:$0xff]
    %v68 = vld [vmem:[#allocation2 + $0x8] sm:$0xff]
    %v69 = vsub.f32 %v65, %v67
    %v70 = vsub.f32 %v66, %v68
    %v71 = vand.u32 2147483647, %v69
    %v72 = vand.u32 2147483647, %v70
    %v73 = vmul.f32 %v71, 0.5
    %v74 = vmul.f32 %v72, 0.5
    %v75 = vadd.f32 %v73, 1.0
    %v76 = vlog2.pop %v75
    %v77 = vmul.f32 %v76, 0.6931472
    %v78 = vmul.f32 -0.5, %v73
    %v79 = vadd.f32 %v78, 1.0
    %v80 = vmul.f32 %v79, %v73
    %v81 = vand.u32 2147483647, %v73
    %vm82 = vcmp.lt.f32.partialorder %v81, 0.0004427343
    %v83 = vsel %vm82, %v80, %v77
    %v84 = vadd.f32 %v74, 1.0
    %v85 = vlog2.pop %v84
    %v86 = vmul.f32 %v85, 0.6931472
    %v87 = vmul.f32 -0.5, %v74
    %v88 = vadd.f32 %v87, 1.0
    %v89 = vmul.f32 %v88, %v74
    %v90 = vand.u32 2147483647, %v74
    %vm91 = vcmp.lt.f32.partialorder %v90, 0.0004427343
    %v92 = vsel %vm91, %v89, %v86
    %v93 = vmul.f32 %v83, 10.0
    %v94 = vmul.f32 %v92, 10.0
    %v95 = vsub.f32 %v71, -7.917595
    %v96 = vsub.f32 %v72, -7.917595
    %vm97 = vcmp.lt.f32.partialorder %v71, 10.0
    %vm98 = vcmp.lt.f32.partialorder %v72, 10.0
    %v99 = vsel %vm97, %v93, %v95
    %v100 = vsel %vm98, %v94, %v96
    %s101 = sadd.s32 0, 0
    %p102 = scmp.lt.s32.totalorder %s101, 0
    %s103 = scalar_select %p102, %s101, 0
    %s104 = smul.u32 %s103, 16
    %p105 = scmp.lt.s32.totalorder %s101, 1
    %s106 = sadd.s32 %s104, 16
    %p107 = scmp.le.s32.totalorder %s106, 16
    %p108 = pnand %p105, %p107
    %p109 = pneg %p108
    // Predicated region
    $region22: #{tpu_custom_call.1} parent=1 // pred_check
      _
    $region23: #{tpu_custom_call.1} parent=1 // pred_check_branch
      %111 = sbr.rel (%p108) target = $region25
    $region24: #{tpu_custom_call.1} parent=1 // pred_region
      %v112 = vadd.f32 %v99, %v100
      %v113 = vld [vmem:[#allocation7] sm:$0xff]
      %v114 = vadd.f32 %v113, %v112
      %115 = vst [vmem:[#allocation7] sm:$0xff] %v114
    $region25: #{tpu_custom_call.1} parent=1 // pred_fallthru
      _
    %p116 = pneg %p109
    // Predicated region
    $region26: #{tpu_custom_call.1} parent=1 // pred_check
      _
    $region27: #{tpu_custom_call.1} parent=1 // pred_check_branch
      %118 = sbr.rel (%p109) target = $region29
    $region28: #{tpu_custom_call.1} parent=1 // pred_region
      %s119 = scalar_select %p105, 16, 0
      %v120 = vlaneseq
      %v121 = vshrl.u32 %v120, 7
      %v122 = vadd.s32 %v121, 8
      %v123 = vstv %s104
      %v124 = vadd.s32 %v123, %v121
      %v125 = vadd.s32 %v123, %v122
      %v126 = vstv %s119
      %vm127 = vcmp.lt.s32.totalorder %v124, %v126
      %vm128 = vcmp.lt.s32.totalorder %v125, %v126
      %v129 = vsel %vm127, %v99, 0.0
      %v130 = vsel %vm128, %v100, 0.0
      %v131 = vadd.f32 %v129, %v130
      %v132 = vld [vmem:[#allocation7] sm:$0xff]
      %v133 = vadd.f32 %v132, %v131
      %134 = vst [vmem:[#allocation7] sm:$0xff] %v133
    $region29: #{tpu_custom_call.1} parent=1 // pred_fallthru
      _
    // Predicated region
    $region30: #{tpu_custom_call.1} parent=1 // pred_check
      _
    $region31: #{tpu_custom_call.1} parent=1 // pred_check_branch
      %136 = sbr.rel (0) target = $region33
    $region32: #{tpu_custom_call.1} parent=1 // pred_region
      %s138 = ssub.s32 128, 128
      %139 = vsyncadd [#allocation4], %s138
      %s141 = sshll.u32 [#allocation7], 4
      %s142 = int_to_ptr.vmem [resolvable:$true] %s141
      %144 = dma.vmem_to_hbm [thread:$0]  %s142, 128, %s2, [#allocation4]
    $region33: #{tpu_custom_call.1} parent=1 // pred_fallthru
      _
    // Predicated region
    $region34: #{tpu_custom_call.1} parent=1 // pred_check
      _
    $region35: #{tpu_custom_call.1} parent=1 // pred_check_branch
      %146 = sbr.rel (0) target = $region37
    $region36: #{tpu_custom_call.1} parent=1 // pred_region
      %147 = dma.done [#allocation4], 128
    $region37: #{tpu_custom_call.1} parent=1 // pred_fallthru
      _
    %148 = vsyncpa [#allocation3], 1
    %149 = vsyncpa [#allocation6], 1
    %150 = vsyncpa [#allocation4], 1

</llo_original>
